<compile_context>
chip_gen: v5e
topology: v5e:2x2
jax: 0.10.0
libtpu: 0.0.40
codegen_flags: <defaults>
</compile_context>

<pallas_src>
import jax
import jax.numpy as jnp
import numpy as np
from jax.experimental import pallas as pl
from jax.experimental.pallas import tpu as pltpu

MAX_WORDS = 30
EMB_DIM = 300        # fastText cc.da.300 vectors are 300-d
VOCAB = 128          # synthetic vocabulary size
PAD_ID = -1          # sentinel id for padded word slots -> all-zero output row

# TODO(synk): title.split() / fasttext.get_word_vector() string handling has no
# Pallas equivalent; inputs are pre-tokenized word ids + word counts and a
# synthetic embedding table.


def _embed_kernel(ids_ref, table_ref, out_ref):
    """One grid step = T_TILE titles (T_TILE * MAX_WORDS embedding rows).

    ids_ref  : VMEM (T_TILE*MAX_WORDS, 1)       int32 (PAD_ID marks padding)
    table_ref: VMEM (VOCAB, EMB_DIM)            float32 (resident)
    out_ref  : VMEM (T_TILE*MAX_WORDS, EMB_DIM) float32
    """
    rows = ids_ref.shape[0]
    vocab = table_ref.shape[0]

    # One-hot over the vocabulary, built fully vectorized for the whole tile.
    # PAD_ID (and any id outside [0, VOCAB)) matches no column -> all-zero
    # one-hot row -> zero output row, i.e. the module's zero padding.
    vocab_iota = jax.lax.broadcasted_iota(jnp.int32, (rows, vocab), 1)
    onehot = (vocab_iota == ids_ref[...]).astype(jnp.float32)

    # (rows, VOCAB) @ (VOCAB, EMB_DIM) on the MXU == the embedding gather.
    out_ref[...] = jnp.dot(onehot, table_ref[...],
                           preferred_element_type=jnp.float32)


def _round_up(x, m):
    return (x + m - 1) // m * m


def fasttext_embedding_forward(word_ids, lengths, table, *, t_tile=64):
    """word_ids: int32, input_shape + (MAX_WORDS,)  (pre-tokenized word ids)
       lengths : int32, input_shape                 (real words per title)
       table   : f32,   (VOCAB, EMB_DIM)
       returns : f32,   input_shape + (MAX_WORDS, EMB_DIM)
    """
    input_shape = word_ids.shape[:-1]
    num_titles = int(np.prod(input_shape)) if len(input_shape) else 1
    vocab, emb_dim = table.shape

    # Titles per block: multiple of 4 so t_tile*MAX_WORDS (=rows per block)
    # is a multiple of 8 sublanes.
    t_tile = max(4, min(_round_up(t_tile, 4), _round_up(num_titles, 4)))
    n_pad = _round_up(num_titles, t_tile)
    grid = (n_pad // t_tile,)

    ids = word_ids.reshape(num_titles, MAX_WORDS).astype(jnp.int32)
    lens = lengths.reshape(num_titles, 1).astype(jnp.int32)

    # Tokenizer-style padding (vectorized broadcast compare, no per-title loop):
    # word slots past the title length get PAD_ID so the kernel emits zero rows.
    # NOTE: ids are expected in [0, VOCAB); out-of-range ids also yield zero rows.
    word_pos = jnp.arange(MAX_WORDS, dtype=jnp.int32)[None, :]
    ids = jnp.where(word_pos < lens, ids, PAD_ID)

    # Pad only the tiny id array to a whole number of title tiles; the f32
    # output keeps its exact size (Pallas masks the partial last block's
    # out-of-bounds writes).
    ids = jnp.pad(ids, ((0, n_pad - num_titles), (0, 0)),
                  constant_values=PAD_ID)
    ids_col = ids.reshape(n_pad * MAX_WORDS, 1)

    table_f32 = table.astype(jnp.float32)

    rows_per_tile = t_tile * MAX_WORDS
    out_rows = num_titles * MAX_WORDS

    out = pl.pallas_call(
        _embed_kernel,
        out_shape=jax.ShapeDtypeStruct((out_rows, emb_dim), jnp.float32),
        grid=grid,
        in_specs=[
            pl.BlockSpec((rows_per_tile, 1), lambda t: (t, 0)),
            pl.BlockSpec((vocab, emb_dim), lambda t: (0, 0)),  # resident table
        ],
        out_specs=pl.BlockSpec((rows_per_tile, emb_dim), lambda t: (t, 0)),
        compiler_params=pltpu.CompilerParams(
            dimension_semantics=("parallel",),
            vmem_limit_bytes=32 * 1024 * 1024,
        ),
    )(ids_col, table_f32)

    # Pure reshape of a contiguous array -> no extra HBM copy.
    return out.reshape(input_shape + (MAX_WORDS, emb_dim))


if __name__ == "__main__":
    key = jax.random.PRNGKey(0)
    k_tab, k_ids, k_len = jax.random.split(key, 3)

    # "text" analogue: a (2, 4) batch of titles, already tokenized.
    input_shape = (2, 4)
    table = jax.random.normal(k_tab, (VOCAB, EMB_DIM), dtype=jnp.float32)
    word_ids = jax.random.randint(k_ids, input_shape + (MAX_WORDS,), 0, VOCAB,
                                  dtype=jnp.int32)
    lengths = jax.random.randint(k_len, input_shape, 1, MAX_WORDS + 1,
                                 dtype=jnp.int32)

    out = fasttext_embedding_forward(word_ids, lengths, table)
    out = jax.block_until_ready(out)

    # Pure-JAX reference: gather + zero-pad past `lengths`.
    ref = jnp.take(table, word_ids, axis=0)  # input_shape + (MAX_WORDS, EMB_DIM)
    mask = (jnp.arange(MAX_WORDS)[None, None, :, None]
            < lengths[..., None, None]).astype(jnp.float32)
    ref = ref * mask

    assert out.shape == input_shape + (MAX_WORDS, EMB_DIM)
    assert out.dtype == jnp.float32
    np.testing.assert_allclose(np.asarray(out), np.asarray(ref),
                               rtol=1e-5, atol=1e-5)
    print("KERNEL_OK")
</pallas_src>

<mosaic_0001>
module attributes {stable_mosaic.version = 11 : i64} {
  func.func @_embed_kernel(%arg0: i32, %arg1: memref<240x1xi32, #tpu.memory_space<vmem>>, %arg2: memref<128x300xf32, #tpu.memory_space<vmem>>, %arg3: memref<240x300xf32, #tpu.memory_space<vmem>>) attributes {dimension_semantics = [#tpu.dimension_semantics<parallel>], iteration_bounds = array<i64: 1>, scalar_prefetch = 0 : i64, scratch_operands = 0 : i64, tpu.core_type = #tpu.core_type<tc>, window_params = [{transform_indices = @transform_0, window_bounds = array<i64: 240, 1>}, {pipeline_mode = #tpu.pipeline_mode<synchronous>, transform_indices = @transform_1, window_bounds = array<i64: 128, 300>}, {transform_indices = @transform_2, window_bounds = array<i64: 240, 300>}]} {
    %0 = tpu.iota {dimensions = array<i32: 1>} : vector<240x128xi32>
    %c0 = arith.constant 0 : index
    %c0_0 = arith.constant 0 : index
    %1 = vector.load %arg1[%c0, %c0_0] : memref<240x1xi32, #tpu.memory_space<vmem>>, vector<240x1xi32>
    %2 = vector.broadcast %1 : vector<240x1xi32> to vector<240x128xi32>
    %3 = arith.cmpi eq, %0, %2 : vector<240x128xi32>
    %4 = arith.extui %3 : vector<240x128xi1> to vector<240x128xi32>
    %5 = arith.sitofp %4 : vector<240x128xi32> to vector<240x128xf32>
    %c0_1 = arith.constant 0 : index
    %c0_2 = arith.constant 0 : index
    %6 = vector.load %arg2[%c0_1, %c0_2] : memref<128x300xf32, #tpu.memory_space<vmem>>, vector<128x300xf32>
    %cst = arith.constant dense<0.000000e+00> : vector<240x300xf32>
    %7 = tpu.matmul %5, %6, %cst {dimension_numbers = #tpu.dot_dimension_numbers<[1], [0], [0], [1], [0, 0, 1, 1], [], []>} : vector<240x128xf32>, vector<128x300xf32>, vector<240x300xf32> -> vector<240x300xf32>
    %c0_3 = arith.constant 0 : index
    %c0_4 = arith.constant 0 : index
    %8 = vector.load %arg3[%c0_3, %c0_4] : memref<240x300xf32, #tpu.memory_space<vmem>>, vector<240x300xf32>
    tpu.vector_store %arg3[%c0_3, %c0_4], %7 {strides = array<i32>} : memref<240x300xf32, #tpu.memory_space<vmem>>, vector<240x300xf32>,
    return
  }
  func.func @transform_0(%arg0: i32) -> (i32, i32) {
    %c0_i32 = arith.constant 0 : i32
    %c0_i32_0 = arith.constant 0 : i32
    return %arg0, %c0_i32 : i32, i32
  }
  func.func @transform_1(%arg0: i32) -> (i32, i32) {
    %c0_i32 = arith.constant 0 : i32
    %c0_i32_0 = arith.constant 0 : i32
    %c0_i32_1 = arith.constant 0 : i32
    return %c0_i32, %c0_i32_0 : i32, i32
  }
  func.func @transform_2(%arg0: i32) -> (i32, i32) {
    %c0_i32 = arith.constant 0 : i32
    %c0_i32_0 = arith.constant 0 : i32
    return %arg0, %c0_i32 : i32, i32
  }
}

</mosaic_0001>

<llo_original>
// kernel: tpu_custom_call.1
$region0: #{tpu_custom_call.1}
  #allocation0 [shape = 'u32[]', space=smem, size = 0x4, offset = 0x4, fixed_abs, tag = 'smem constant byte address 0x4 - core index']
  #allocation1 [shape = 'u32[72,128]{1,0:T(1,128)}', space=vmem, size = 0x9000, scoped, tag = 'internal scratch']
  %s0 = inlined_call_operand.vmem [shape: s32[240,1], index: 0, kind: input, shape index: {}]
  %s1 = inlined_call_operand.vmem [shape: f32[128,300], index: 1, kind: input, shape index: {}]
  %s2 = inlined_call_operand.vmem [shape: f32[240,300], index: 2, kind: output, shape index: {}]
  %s3 = sld [smem:[#allocation0]]
  $region18: #{tpu_custom_call.1} parent=0
    _
  %s5 = ssub.s32 1, %s3
  %s6 = scalar_select 0, %s5, %s3
  // Predicated region
  $region2: #{tpu_custom_call.1} parent=0 // pred_check
    _
  $region3: #{tpu_custom_call.1} parent=0 // pred_check_branch
    %8 = sbr.rel (0) target = $region5
  $region4: #{tpu_custom_call.1} parent=0 // pred_region
    _
  $region5: #{tpu_custom_call.1} parent=0 // pred_fallthru
    _
  // Predicated region
  $region6: #{tpu_custom_call.1} parent=0 // pred_check
    _
  $region7: #{tpu_custom_call.1} parent=0 // pred_check_branch
    %10 = sbr.rel (0) target = $region9
  $region8: #{tpu_custom_call.1} parent=0 // pred_region
    _
  $region9: #{tpu_custom_call.1} parent=0 // pred_fallthru
    _
  %v11 = vlaneseq
  %v12 = vand.u32 %v11, 127
  %v13 = vld [vmem:[%s0] sm:$0xff]
  %v14 = vld [vmem:[%s0 + $0x8] sm:$0xff]
  %v15 = vld [vmem:[%s0 + $0x10] sm:$0xff]
  %v16 = vld [vmem:[%s0 + $0x18] sm:$0xff]
  %v17 = vld [vmem:[%s0 + $0x20] sm:$0xff]
  %v18 = vld [vmem:[%s0 + $0x28] sm:$0xff]
  %v19 = vld [vmem:[%s0 + $0x30] sm:$0xff]
  %v20 = vld [vmem:[%s0 + $0x38] sm:$0xff]
  %v21 = vld [vmem:[%s0 + $0x40] sm:$0xff]
  %v22 = vld [vmem:[%s0 + $0x48] sm:$0xff]
  %v23 = vld [vmem:[%s0 + $0x50] sm:$0xff]
  %v24 = vld [vmem:[%s0 + $0x58] sm:$0xff]
  %v25 = vld [vmem:[%s0 + $0x60] sm:$0xff]
  %v26 = vld [vmem:[%s0 + $0x68] sm:$0xff]
  %v27 = vld [vmem:[%s0 + $0x70] sm:$0xff]
  %v28 = vld [vmem:[%s0 + $0x78] sm:$0xff]
  %v29 = vld [vmem:[%s0 + $0x80] sm:$0xff]
  %v30 = vld [vmem:[%s0 + $0x88] sm:$0xff]
  %v31 = vld [vmem:[%s0 + $0x90] sm:$0xff]
  %v32 = vld [vmem:[%s0 + $0x98] sm:$0xff]
  %v33 = vld [vmem:[%s0 + $0xa0] sm:$0xff]
  %v34 = vld [vmem:[%s0 + $0xa8] sm:$0xff]
  %v35 = vld [vmem:[%s0 + $0xb0] sm:$0xff]
  %v36 = vld [vmem:[%s0 + $0xb8] sm:$0xff]
  %v37 = vld [vmem:[%s0 + $0xc0] sm:$0xff]
  %v38 = vld [vmem:[%s0 + $0xc8] sm:$0xff]
  %v39 = vld [vmem:[%s0 + $0xd0] sm:$0xff]
  %v40 = vld [vmem:[%s0 + $0xd8] sm:$0xff]
  %v41 = vld [vmem:[%s0 + $0xe0] sm:$0xff]
  %v42 = vld [vmem:[%s0 + $0xe8] sm:$0xff]
  %43 = vset.pattern.permute.xlu0 0
  %44 = vperm.xlu0 %43, %v13
  %v45 = vpop.permute.xlu0 %44
  %46 = vset.pattern.permute.xlu0 0
  %47 = vperm.xlu0 %46, %v14
  %v48 = vpop.permute.xlu0 %47
  %49 = vset.pattern.permute.xlu0 0
  %50 = vperm.xlu0 %49, %v15
  %v51 = vpop.permute.xlu0 %50
  %52 = vset.pattern.permute.xlu0 0
  %53 = vperm.xlu0 %52, %v16
  %v54 = vpop.permute.xlu0 %53
  %55 = vset.pattern.permute.xlu0 0
  %56 = vperm.xlu0 %55, %v17
  %v57 = vpop.permute.xlu0 %56
  %58 = vset.pattern.permute.xlu0 0
  %59 = vperm.xlu0 %58, %v18
  %v60 = vpop.permute.xlu0 %59
  %61 = vset.pattern.permute.xlu0 0
  %62 = vperm.xlu0 %61, %v19
  %v63 = vpop.permute.xlu0 %62
  %64 = vset.pattern.permute.xlu0 0
  %65 = vperm.xlu0 %64, %v20
  %v66 = vpop.permute.xlu0 %65
  %67 = vset.pattern.permute.xlu0 0
  %68 = vperm.xlu0 %67, %v21
  %v69 = vpop.permute.xlu0 %68
  %70 = vset.pattern.permute.xlu0 0
  %71 = vperm.xlu0 %70, %v22
  %v72 = vpop.permute.xlu0 %71
  %73 = vset.pattern.permute.xlu0 0
  %74 = vperm.xlu0 %73, %v23
  %v75 = vpop.permute.xlu0 %74
  %76 = vset.pattern.permute.xlu0 0
  %77 = vperm.xlu0 %76, %v24
  %v78 = vpop.permute.xlu0 %77
  %79 = vset.pattern.permute.xlu0 0
  %80 = vperm.xlu0 %79, %v25
  %v81 = vpop.permute.xlu0 %80
  %82 = vset.pattern.permute.xlu0 0
  %83 = vperm.xlu0 %82, %v26
  %v84 = vpop.permute.xlu0 %83
  %85 = vset.pattern.permute.xlu0 0
  %86 = vperm.xlu0 %85, %v27
  %v87 = vpop.permute.xlu0 %86
  %88 = vset.pattern.permute.xlu0 0
  %89 = vperm.xlu0 %88, %v28
  %v90 = vpop.permute.xlu0 %89
  %91 = vset.pattern.permute.xlu0 0
  %92 = vperm.xlu0 %91, %v29
  %v93 = vpop.permute.xlu0 %92
  %94 = vset.pattern.permute.xlu0 0
  %95 = vperm.xlu0 %94, %v30
  %v96 = vpop.permute.xlu0 %95
  %97 = vset.pattern.permute.xlu0 0
  %98 = vperm.xlu0 %97, %v31
  %v99 = vpop.permute.xlu0 %98
  %100 = vset.pattern.permute.xlu0 0
  %101 = vperm.xlu0 %100, %v32
  %v102 = vpop.permute.xlu0 %101
  %103 = vset.pattern.permute.xlu0 0
  %104 = vperm.xlu0 %103, %v33
  %v105 = vpop.permute.xlu0 %104
  %106 = vset.pattern.permute.xlu0 0
  %107 = vperm.xlu0 %106, %v34
  %v108 = vpop.permute.xlu0 %107
  %109 = vset.pattern.permute.xlu0 0
  %110 = vperm.xlu0 %109, %v35
  %v111 = vpop.permute.xlu0 %110
  %112 = vset.pattern.permute.xlu0 0
  %113 = vperm.xlu0 %112, %v36
  %v114 = vpop.permute.xlu0 %113
  %115 = vset.pattern.permute.xlu0 0
  %116 = vperm.xlu0 %115, %v37
  %v117 = vpop.permute.xlu0 %116
  %118 = vset.pattern.permute.xlu0 0
  %119 = vperm.xlu0 %118, %v38
  %v120 = vpop.permute.xlu0 %119
  %121 = vset.pattern.permute.xlu0 0
  %122 = vperm.xlu0 %121, %v39
  %v123 = vpop.permute.xlu0 %122
  %124 = vset.pattern.permute.xlu0 0
  %125 = vperm.xlu0 %124, %v40
  %v126 = vpop.permute.xlu0 %125
  %127 = vset.pattern.permute.xlu0 0
  %128 = vperm.xlu0 %127, %v41
  %v129 = vpop.permute.xlu0 %128
  %130 = vset.pattern.permute.xlu0 0
  %131 = vperm.xlu0 %130, %v42
  %v132 = vpop.permute.xlu0 %131
  %vm133 = vcmp.eq.s32.totalorder %v12, %v45
  %vm134 = vcmp.eq.s32.totalorder %v12, %v48
  %vm135 = vcmp.eq.s32.totalorder %v12, %v51
  %vm136 = vcmp.eq.s32.totalorder %v12, %v54
  %vm137 = vcmp.eq.s32.totalorder %v12, %v57
  %vm138 = vcmp.eq.s32.totalorder %v12, %v60
  %vm139 = vcmp.eq.s32.totalorder %v12, %v63
  %vm140 = vcmp.eq.s32.totalorder %v12, %v66
  %vm141 = vcmp.eq.s32.totalorder %v12, %v69
  %vm142 = vcmp.eq.s32.totalorder %v12, %v72
  %vm143 = vcmp.eq.s32.totalorder %v12, %v75
  %vm144 = vcmp.eq.s32.totalorder %v12, %v78
  %vm145 = vcmp.eq.s32.totalorder %v12, %v81
  %vm146 = vcmp.eq.s32.totalorder %v12, %v84
  %vm147 = vcmp.eq.s32.totalorder %v12, %v87
  %vm148 = vcmp.eq.s32.totalorder %v12, %v90
  %vm149 = vcmp.eq.s32.totalorder %v12, %v93
  %vm150 = vcmp.eq.s32.totalorder %v12, %v96
  %vm151 = vcmp.eq.s32.totalorder %v12, %v99
  %vm152 = vcmp.eq.s32.totalorder %v12, %v102
  %vm153 = vcmp.eq.s32.totalorder %v12, %v105
  %vm154 = vcmp.eq.s32.totalorder %v12, %v108
  %vm155 = vcmp.eq.s32.totalorder %v12, %v111
  %vm156 = vcmp.eq.s32.totalorder %v12, %v114
  %vm157 = vcmp.eq.s32.totalorder %v12, %v117
  %vm158 = vcmp.eq.s32.totalorder %v12, %v120
  %vm159 = vcmp.eq.s32.totalorder %v12, %v123
  %vm160 = vcmp.eq.s32.totalorder %v12, %v126
  %vm161 = vcmp.eq.s32.totalorder %v12, %v129
  %vm162 = vcmp.eq.s32.totalorder %v12, %v132
  %v163 = vsel %vm133, 1, 0
  %v164 = vsel %vm134, 1, 0
  %v165 = vsel %vm135, 1, 0
  %v166 = vsel %vm136, 1, 0
  %v167 = vsel %vm137, 1, 0
  %v168 = vsel %vm138, 1, 0
  %v169 = vsel %vm139, 1, 0
  %v170 = vsel %vm140, 1, 0
  %v171 = vsel %vm141, 1, 0
  %v172 = vsel %vm142, 1, 0
  %v173 = vsel %vm143, 1, 0
  %v174 = vsel %vm144, 1, 0
  %v175 = vsel %vm145, 1, 0
  %v176 = vsel %vm146, 1, 0
  %v177 = vsel %vm147, 1, 0
  %v178 = vsel %vm148, 1, 0
  %v179 = vsel %vm149, 1, 0
  %v180 = vsel %vm150, 1, 0
  %v181 = vsel %vm151, 1, 0
  %v182 = vsel %vm152, 1, 0
  %v183 = vsel %vm153, 1, 0
  %v184 = vsel %vm154, 1, 0
  %v185 = vsel %vm155, 1, 0
  %v186 = vsel %vm156, 1, 0
  %v187 = vsel %vm157, 1, 0
  %v188 = vsel %vm158, 1, 0
  %v189 = vsel %vm159, 1, 0
  %v190 = vsel %vm160, 1, 0
  %v191 = vsel %vm161, 1, 0
  %v192 = vsel %vm162, 1, 0
  %v193 = vcvt.s32.f32 %v163
  %v194 = vcvt.s32.f32 %v164
  %v195 = vcvt.s32.f32 %v165
  %v196 = vcvt.s32.f32 %v166
  %v197 = vcvt.s32.f32 %v167
  %v198 = vcvt.s32.f32 %v168
  %v199 = vcvt.s32.f32 %v169
  %v200 = vcvt.s32.f32 %v170
  %v201 = vcvt.s32.f32 %v171
  %v202 = vcvt.s32.f32 %v172
  %v203 = vcvt.s32.f32 %v173
  %v204 = vcvt.s32.f32 %v174
  %v205 = vcvt.s32.f32 %v175
  %v206 = vcvt.s32.f32 %v176
  %v207 = vcvt.s32.f32 %v177
  %v208 = vcvt.s32.f32 %v178
  %v209 = vcvt.s32.f32 %v179
  %v210 = vcvt.s32.f32 %v180
  %v211 = vcvt.s32.f32 %v181
  %v212 = vcvt.s32.f32 %v182
  %v213 = vcvt.s32.f32 %v183
  %v214 = vcvt.s32.f32 %v184
  %v215 = vcvt.s32.f32 %v185
  %v216 = vcvt.s32.f32 %v186
  %v217 = vcvt.s32.f32 %v187
  %v218 = vcvt.s32.f32 %v188
  %v219 = vcvt.s32.f32 %v189
  %v220 = vcvt.s32.f32 %v190
  %v221 = vcvt.s32.f32 %v191
  %v222 = vcvt.s32.f32 %v192
  %v223 = vld [vmem:[%s1] sm:$0xff]
  %v224 = vld [vmem:[%s1 + $0x8] sm:$0xff]
  %v225 = vld [vmem:[%s1 + $0x10] sm:$0xff]
  %v226 = vld [vmem:[%s1 + $0x18] sm:$0xff]
  %v227 = vld [vmem:[%s1 + $0x20] sm:$0xff]
  %v228 = vld [vmem:[%s1 + $0x28] sm:$0xff]
  %v229 = vld [vmem:[%s1 + $0x30] sm:$0xff]
  %v230 = vld [vmem:[%s1 + $0x38] sm:$0xff]
  %v231 = vld [vmem:[%s1 + $0x40] sm:$0xff]
  %v232 = vld [vmem:[%s1 + $0x48] sm:$0xff]
  %v233 = vld [vmem:[%s1 + $0x50] sm:$0xff]
  %v234 = vld [vmem:[%s1 + $0x58] sm:$0xff]
  %v235 = vld [vmem:[%s1 + $0x60] sm:$0xff]
  %v236 = vld [vmem:[%s1 + $0x68] sm:$0xff]
  %v237 = vld [vmem:[%s1 + $0x70] sm:$0xff]
  %v238 = vld [vmem:[%s1 + $0x78] sm:$0xff]
  %v239 = vld [vmem:[%s1 + $0x80] sm:$0xff]
  %v240 = vld [vmem:[%s1 + $0x88] sm:$0xff]
  %v241 = vld [vmem:[%s1 + $0x90] sm:$0xff]
  %v242 = vld [vmem:[%s1 + $0x98] sm:$0xff]
  %v243 = vld [vmem:[%s1 + $0xa0] sm:$0xff]
  %v244 = vld [vmem:[%s1 + $0xa8] sm:$0xff]
  %v245 = vld [vmem:[%s1 + $0xb0] sm:$0xff]
  %v246 = vld [vmem:[%s1 + $0xb8] sm:$0xff]
  %v247 = vld [vmem:[%s1 + $0xc0] sm:$0xff]
  %v248 = vld [vmem:[%s1 + $0xc8] sm:$0xff]
  %v249 = vld [vmem:[%s1 + $0xd0] sm:$0xff]
  %v250 = vld [vmem:[%s1 + $0xd8] sm:$0xff]
  %v251 = vld [vmem:[%s1 + $0xe0] sm:$0xff]
  %v252 = vld [vmem:[%s1 + $0xe8] sm:$0xff]
  %v253 = vld [vmem:[%s1 + $0xf0] sm:$0xff]
  %v254 = vld [vmem:[%s1 + $0xf8] sm:$0xff]
  %v255 = vld [vmem:[%s1 + $0x100] sm:$0xff]
  %v256 = vld [vmem:[%s1 + $0x108] sm:$0xff]
  %v257 = vld [vmem:[%s1 + $0x110] sm:$0xff]
  %v258 = vld [vmem:[%s1 + $0x118] sm:$0xff]
  %v259 = vld [vmem:[%s1 + $0x120] sm:$0xff]
  %v260 = vld [vmem:[%s1 + $0x128] sm:$0xff]
  %v261 = vld [vmem:[%s1 + $0x130] sm:$0xff]
  %v262 = vld [vmem:[%s1 + $0x138] sm:$0xff]
  %v263 = vld [vmem:[%s1 + $0x140] sm:$0xff]
  %v264 = vld [vmem:[%s1 + $0x148] sm:$0xff]
  %v265 = vld [vmem:[%s1 + $0x150] sm:$0xff]
  %v266 = vld [vmem:[%s1 + $0x158] sm:$0xff]
  %v267 = vld [vmem:[%s1 + $0x160] sm:$0xff]
  %v268 = vld [vmem:[%s1 + $0x168] sm:$0xff]
  %v269 = vld [vmem:[%s1 + $0x170] sm:$0xff]
  %v270 = vld [vmem:[%s1 + $0x178] sm:$0xff]
  %271 = vmatpush.msra.mxu0 %v268
  %272 = vmatpush.msra.mxu0 %v265
  %273 = vmatpush.msra.mxu0 %v262
  %274 = vmatpush.msra.mxu0 %v259
  %275 = vmatpush.msra.mxu0 %v256
  %276 = vmatpush.msra.mxu0 %v253
  %277 = vmatpush.msra.mxu0 %v250
  %278 = vmatpush.msra.mxu0 %v247
  %279 = vmatpush.msra.mxu0 %v244
  %280 = vmatpush.msra.mxu0 %v241
  %281 = vmatpush.msra.mxu0 %v238
  %282 = vmatpush.msra.mxu0 %v235
  %283 = vmatpush.msra.mxu0 %v232
  %284 = vmatpush.msra.mxu0 %v229
  %285 = vmatpush.msra.mxu0 %v226
  %286 = vmatpush.msra.mxu0 %v223
  %287 = vmatmul.f32.gmra.mxu0 %v193
  %v288 = vpop.f32.mrf.mxu0
  %v289 = vadd.f32 0.0, %v288
  %290 = vmatmul.f32.gmra.mxu0 %v194
  %v291 = vpop.f32.mrf.mxu0
  %v292 = vadd.f32 0.0, %v291
  %293 = vmatmul.f32.gmra.mxu0 %v195
  %v294 = vpop.f32.mrf.mxu0
  %v295 = vadd.f32 0.0, %v294
  %296 = vmatmul.f32.gmra.mxu0 %v196
  %v297 = vpop.f32.mrf.mxu0
  %v298 = vadd.f32 0.0, %v297
  %299 = vmatmul.f32.gmra.mxu0 %v197
  %v300 = vpop.f32.mrf.mxu0
  %v301 = vadd.f32 0.0, %v300
  %302 = vmatmul.f32.gmra.mxu0 %v198
  %v303 = vpop.f32.mrf.mxu0
  %v304 = vadd.f32 0.0, %v303
  %305 = vmatmul.f32.gmra.mxu0 %v199
  %v306 = vpop.f32.mrf.mxu0
  %v307 = vadd.f32 0.0, %v306
  %308 = vmatmul.f32.gmra.mxu0 %v200
  %v309 = vpop.f32.mrf.mxu0
  %v310 = vadd.f32 0.0, %v309
  %311 = vmatmul.f32.gmra.mxu0 %v201
  %v312 = vpop.f32.mrf.mxu0
  %v313 = vadd.f32 0.0, %v312
  %314 = vmatmul.f32.gmra.mxu0 %v202
  %v315 = vpop.f32.mrf.mxu0
  %v316 = vadd.f32 0.0, %v315
  %317 = vmatmul.f32.gmra.mxu0 %v203
  %v318 = vpop.f32.mrf.mxu0
  %v319 = vadd.f32 0.0, %v318
  %320 = vmatmul.f32.gmra.mxu0 %v204
  %v321 = vpop.f32.mrf.mxu0
  %v322 = vadd.f32 0.0, %v321
  %323 = vmatmul.f32.gmra.mxu0 %v205
  %v324 = vpop.f32.mrf.mxu0
  %v325 = vadd.f32 0.0, %v324
  %326 = vmatmul.f32.gmra.mxu0 %v206
  %v327 = vpop.f32.mrf.mxu0
  %v328 = vadd.f32 0.0, %v327
  %329 = vmatmul.f32.gmra.mxu0 %v207
  %v330 = vpop.f32.mrf.mxu0
  %v331 = vadd.f32 0.0, %v330
  %332 = vmatmul.f32.gmra.mxu0 %v208
  %v333 = vpop.f32.mrf.mxu0
  %v334 = vadd.f32 0.0, %v333
  %335 = vmatmul.f32.gmra.mxu0 %v209
  %v336 = vpop.f32.mrf.mxu0
  %v337 = vadd.f32 0.0, %v336
  %338 = vmatmul.f32.gmra.mxu0 %v210
  %v339 = vpop.f32.mrf.mxu0
  %v340 = vadd.f32 0.0, %v339
  %341 = vmatmul.f32.gmra.mxu0 %v211
  %v342 = vpop.f32.mrf.mxu0
  %v343 = vadd.f32 0.0, %v342
  %344 = vmatmul.f32.gmra.mxu0 %v212
  %v345 = vpop.f32.mrf.mxu0
  %v346 = vadd.f32 0.0, %v345
  %347 = vmatmul.f32.gmra.mxu0 %v213
  %v348 = vpop.f32.mrf.mxu0
  %v349 = vadd.f32 0.0, %v348
  %350 = vmatmul.f32.gmra.mxu0 %v214
  %v351 = vpop.f32.mrf.mxu0
  %v352 = vadd.f32 0.0, %v351
  %353 = vmatmul.f32.gmra.mxu0 %v215
  %v354 = vpop.f32.mrf.mxu0
  %v355 = vadd.f32 0.0, %v354
  %356 = vmatmul.f32.gmra.mxu0 %v216
  %v357 = vpop.f32.mrf.mxu0
  %v358 = vadd.f32 0.0, %v357
  %359 = vmatmul.f32.gmra.mxu0 %v217
  %v360 = vpop.f32.mrf.mxu0
  %v361 = vadd.f32 0.0, %v360
  %362 = vmatmul.f32.gmra.mxu0 %v218
  %v363 = vpop.f32.mrf.mxu0
  %v364 = vadd.f32 0.0, %v363
  %365 = vmatmul.f32.gmra.mxu0 %v219
  %v366 = vpop.f32.mrf.mxu0
  %v367 = vadd.f32 0.0, %v366
  %368 = vmatmul.f32.gmra.mxu0 %v220
  %v369 = vpop.f32.mrf.mxu0
  %v370 = vadd.f32 0.0, %v369
  %371 = vmatmul.f32.gmra.mxu0 %v221
  %v372 = vpop.f32.mrf.mxu0
  %v373 = vadd.f32 0.0, %v372
  %374 = vmatmul.f32.gmra.mxu0 %v222
  %v375 = vpop.f32.mrf.mxu0
  %v376 = vadd.f32 0.0, %v375
  %377 = vdwg.mxu0
  %378 = vmatpush.msra.mxu0 %v269
  %379 = vmatpush.msra.mxu0 %v266
  %380 = vmatpush.msra.mxu0 %v263
  %381 = vmatpush.msra.mxu0 %v260
  %382 = vmatpush.msra.mxu0 %v257
  %383 = vmatpush.msra.mxu0 %v254
  %384 = vmatpush.msra.mxu0 %v251
  %385 = vmatpush.msra.mxu0 %v248
  %386 = vmatpush.msra.mxu0 %v245
  %387 = vmatpush.msra.mxu0 %v242
  %388 = vmatpush.msra.mxu0 %v239
  %389 = vmatpush.msra.mxu0 %v236
  %390 = vmatpush.msra.mxu0 %v233
  %391 = vmatpush.msra.mxu0 %v230
  %392 = vmatpush.msra.mxu0 %v227
  %393 = vmatpush.msra.mxu0 %v224
  %394 = vmatmul.f32.gmra.mxu0 %v193
  %v395 = vpop.f32.mrf.mxu0
  %v396 = vadd.f32 0.0, %v395
  %397 = vmatmul.f32.gmra.mxu0 %v194
  %v398 = vpop.f32.mrf.mxu0
  %v399 = vadd.f32 0.0, %v398
  %400 = vmatmul.f32.gmra.mxu0 %v195
  %v401 = vpop.f32.mrf.mxu0
  %v402 = vadd.f32 0.0, %v401
  %403 = vmatmul.f32.gmra.mxu0 %v196
  %v404 = vpop.f32.mrf.mxu0
  %v405 = vadd.f32 0.0, %v404
  %406 = vmatmul.f32.gmra.mxu0 %v197
  %v407 = vpop.f32.mrf.mxu0
  %v408 = vadd.f32 0.0, %v407
  %409 = vmatmul.f32.gmra.mxu0 %v198
  %v410 = vpop.f32.mrf.mxu0
  %v411 = vadd.f32 0.0, %v410
  %412 = vmatmul.f32.gmra.mxu0 %v199
  %v413 = vpop.f32.mrf.mxu0
  %v414 = vadd.f32 0.0, %v413
  %415 = vmatmul.f32.gmra.mxu0 %v200
  %v416 = vpop.f32.mrf.mxu0
  %v417 = vadd.f32 0.0, %v416
  %418 = vmatmul.f32.gmra.mxu0 %v201
  %v419 = vpop.f32.mrf.mxu0
  %v420 = vadd.f32 0.0, %v419
  %421 = vmatmul.f32.gmra.mxu0 %v202
  %v422 = vpop.f32.mrf.mxu0
  %v423 = vadd.f32 0.0, %v422
  %424 = vmatmul.f32.gmra.mxu0 %v203
  %v425 = vpop.f32.mrf.mxu0
  %v426 = vadd.f32 0.0, %v425
  %427 = vmatmul.f32.gmra.mxu0 %v204
  %v428 = vpop.f32.mrf.mxu0
  %v429 = vadd.f32 0.0, %v428
  %430 = vmatmul.f32.gmra.mxu0 %v205
  %v431 = vpop.f32.mrf.mxu0
  %v432 = vadd.f32 0.0, %v431
  %433 = vmatmul.f32.gmra.mxu0 %v206
  %v434 = vpop.f32.mrf.mxu0
  %v435 = vadd.f32 0.0, %v434
  %436 = vmatmul.f32.gmra.mxu0 %v207
  %v437 = vpop.f32.mrf.mxu0
  %v438 = vadd.f32 0.0, %v437
  %439 = vmatmul.f32.gmra.mxu0 %v208
  %v440 = vpop.f32.mrf.mxu0
  %v441 = vadd.f32 0.0, %v440
  %442 = vmatmul.f32.gmra.mxu0 %v209
  %v443 = vpop.f32.mrf.mxu0
  %v444 = vadd.f32 0.0, %v443
  %445 = vmatmul.f32.gmra.mxu0 %v210
  %v446 = vpop.f32.mrf.mxu0
  %v447 = vadd.f32 0.0, %v446
  %448 = vmatmul.f32.gmra.mxu0 %v211
  %v449 = vpop.f32.mrf.mxu0
  %v450 = vadd.f32 0.0, %v449
  %451 = vmatmul.f32.gmra.mxu0 %v212
  %v452 = vpop.f32.mrf.mxu0
  %v453 = vadd.f32 0.0, %v452
  %454 = vmatmul.f32.gmra.mxu0 %v213
  %v455 = vpop.f32.mrf.mxu0
  %v456 = vadd.f32 0.0, %v455
  %457 = vmatmul.f32.gmra.mxu0 %v214
  %v458 = vpop.f32.mrf.mxu0
  %v459 = vadd.f32 0.0, %v458
  %460 = vmatmul.f32.gmra.mxu0 %v215
  %v461 = vpop.f32.mrf.mxu0
  %v462 = vadd.f32 0.0, %v461
  %463 = vmatmul.f32.gmra.mxu0 %v216
  %v464 = vpop.f32.mrf.mxu0
  %v465 = vadd.f32 0.0, %v464
  %466 = vmatmul.f32.gmra.mxu0 %v217
  %v467 = vpop.f32.mrf.mxu0
  %v468 = vadd.f32 0.0, %v467
  %469 = vmatmul.f32.gmra.mxu0 %v218
  %v470 = vpop.f32.mrf.mxu0
  %v471 = vadd.f32 0.0, %v470
  %472 = vmatmul.f32.gmra.mxu0 %v219
  %v473 = vpop.f32.mrf.mxu0
  %v474 = vadd.f32 0.0, %v473
  %475 = vmatmul.f32.gmra.mxu0 %v220
  %v476 = vpop.f32.mrf.mxu0
  %v477 = vadd.f32 0.0, %v476
  %478 = vmatmul.f32.gmra.mxu0 %v221
  %v479 = vpop.f32.mrf.mxu0
  %v480 = vadd.f32 0.0, %v479
  %481 = vmatmul.f32.gmra.mxu0 %v222
  %v482 = vpop.f32.mrf.mxu0
  %v483 = vadd.f32 0.0, %v482
  %484 = vdwg.mxu0
  %485 = vmatpush.msra.mxu0 %v270
  %486 = vmatpush.msra.mxu0 %v267
  %487 = vmatpush.msra.mxu0 %v264
  %488 = vmatpush.msra.mxu0 %v261
  %489 = vmatpush.msra.mxu0 %v258
  %490 = vmatpush.msra.mxu0 %v255
  %491 = vmatpush.msra.mxu0 %v252
  %492 = vmatpush.msra.mxu0 %v249
  %493 = vmatpush.msra.mxu0 %v246
  %494 = vmatpush.msra.mxu0 %v243
  %495 = vmatpush.msra.mxu0 %v240
  %496 = vmatpush.msra.mxu0 %v237
  %497 = vmatpush.msra.mxu0 %v234
  %498 = vmatpush.msra.mxu0 %v231
  %499 = vmatpush.msra.mxu0 %v228
  %500 = vmatpush.msra.mxu0 %v225
  %501 = vmatmul.f32.gmra.mxu0 %v193
  %v502 = vpop.f32.mrf.mxu0
  %v503 = vadd.f32 0.0, %v502
  %504 = vmatmul.f32.gmra.mxu0 %v194
  %v505 = vpop.f32.mrf.mxu0
  %v506 = vadd.f32 0.0, %v505
  %507 = vmatmul.f32.gmra.mxu0 %v195
  %v508 = vpop.f32.mrf.mxu0
  %v509 = vadd.f32 0.0, %v508
  %510 = vmatmul.f32.gmra.mxu0 %v196
  %v511 = vpop.f32.mrf.mxu0
  %v512 = vadd.f32 0.0, %v511
  %513 = vmatmul.f32.gmra.mxu0 %v197
  %v514 = vpop.f32.mrf.mxu0
  %v515 = vadd.f32 0.0, %v514
  %516 = vmatmul.f32.gmra.mxu0 %v198
  %v517 = vpop.f32.mrf.mxu0
  %v518 = vadd.f32 0.0, %v517
  %519 = vmatmul.f32.gmra.mxu0 %v199
  %v520 = vpop.f32.mrf.mxu0
  %v521 = vadd.f32 0.0, %v520
  %522 = vmatmul.f32.gmra.mxu0 %v200
  %v523 = vpop.f32.mrf.mxu0
  %v524 = vadd.f32 0.0, %v523
  %525 = vmatmul.f32.gmra.mxu0 %v201
  %v526 = vpop.f32.mrf.mxu0
  %v527 = vadd.f32 0.0, %v526
  %528 = vmatmul.f32.gmra.mxu0 %v202
  %v529 = vpop.f32.mrf.mxu0
  %v530 = vadd.f32 0.0, %v529
  %531 = vmatmul.f32.gmra.mxu0 %v203
  %v532 = vpop.f32.mrf.mxu0
  %v533 = vadd.f32 0.0, %v532
  %534 = vmatmul.f32.gmra.mxu0 %v204
  %v535 = vpop.f32.mrf.mxu0
  %v536 = vadd.f32 0.0, %v535
  %537 = vmatmul.f32.gmra.mxu0 %v205
  %v538 = vpop.f32.mrf.mxu0
  %v539 = vadd.f32 0.0, %v538
  %540 = vmatmul.f32.gmra.mxu0 %v206
  %v541 = vpop.f32.mrf.mxu0
  %v542 = vadd.f32 0.0, %v541
  %543 = vmatmul.f32.gmra.mxu0 %v207
  %v544 = vpop.f32.mrf.mxu0
  %v545 = vadd.f32 0.0, %v544
  %546 = vmatmul.f32.gmra.mxu0 %v208
  %v547 = vpop.f32.mrf.mxu0
  %v548 = vadd.f32 0.0, %v547
  %549 = vmatmul.f32.gmra.mxu0 %v209
  %v550 = vpop.f32.mrf.mxu0
  %v551 = vadd.f32 0.0, %v550
  %552 = vmatmul.f32.gmra.mxu0 %v210
  %v553 = vpop.f32.mrf.mxu0
  %v554 = vadd.f32 0.0, %v553
  %555 = vmatmul.f32.gmra.mxu0 %v211
  %v556 = vpop.f32.mrf.mxu0
  %v557 = vadd.f32 0.0, %v556
  %558 = vmatmul.f32.gmra.mxu0 %v212
  %v559 = vpop.f32.mrf.mxu0
  %v560 = vadd.f32 0.0, %v559
  %561 = vmatmul.f32.gmra.mxu0 %v213
  %v562 = vpop.f32.mrf.mxu0
  %v563 = vadd.f32 0.0, %v562
  %564 = vmatmul.f32.gmra.mxu0 %v214
  %v565 = vpop.f32.mrf.mxu0
  %v566 = vadd.f32 0.0, %v565
  %567 = vmatmul.f32.gmra.mxu0 %v215
  %v568 = vpop.f32.mrf.mxu0
  %v569 = vadd.f32 0.0, %v568
  %570 = vmatmul.f32.gmra.mxu0 %v216
  %v571 = vpop.f32.mrf.mxu0
  %v572 = vadd.f32 0.0, %v571
  %573 = vmatmul.f32.gmra.mxu0 %v217
  %v574 = vpop.f32.mrf.mxu0
  %v575 = vadd.f32 0.0, %v574
  %576 = vmatmul.f32.gmra.mxu0 %v218
  %v577 = vpop.f32.mrf.mxu0
  %v578 = vadd.f32 0.0, %v577
  %579 = vmatmul.f32.gmra.mxu0 %v219
  %v580 = vpop.f32.mrf.mxu0
  %v581 = vadd.f32 0.0, %v580
  %582 = vmatmul.f32.gmra.mxu0 %v220
  %v583 = vpop.f32.mrf.mxu0
  %v584 = vadd.f32 0.0, %v583
  %585 = vmatmul.f32.gmra.mxu0 %v221
  %v586 = vpop.f32.mrf.mxu0
  %v587 = vadd.f32 0.0, %v586
  %588 = vmatmul.f32.gmra.mxu0 %v222
  %v589 = vpop.f32.mrf.mxu0
  %v590 = vadd.f32 0.0, %v589
  %591 = vdwg.mxu0
  %592 = vst [vmem:[%s2] sm:$0xff] %v289
  %593 = vst [vmem:[%s2 + $0x8] sm:$0xff] %v396
  %vm594 = vcmask 359424
  %595 = vst.msk [vmem:[%s2 + $0x10] sm:$0xff] %vm594, %v503
  %596 = vst [vmem:[%s2 + $0x18] sm:$0xff] %v292
  %597 = vst [vmem:[%s2 + $0x20] sm:$0xff] %v399
  %598 = vst.msk [vmem:[%s2 + $0x28] sm:$0xff] %vm594, %v506
  %599 = vst [vmem:[%s2 + $0x30] sm:$0xff] %v295
  %600 = vst [vmem:[%s2 + $0x38] sm:$0xff] %v402
  %601 = vst.msk [vmem:[%s2 + $0x40] sm:$0xff] %vm594, %v509
  %602 = vst [vmem:[%s2 + $0x48] sm:$0xff] %v298
  %603 = vst [vmem:[%s2 + $0x50] sm:$0xff] %v405
  %604 = vst.msk [vmem:[%s2 + $0x58] sm:$0xff] %vm594, %v512
  %605 = vst [vmem:[%s2 + $0x60] sm:$0xff] %v301
  %606 = vst [vmem:[%s2 + $0x68] sm:$0xff] %v408
  %607 = vst.msk [vmem:[%s2 + $0x70] sm:$0xff] %vm594, %v515
  %608 = vst [vmem:[%s2 + $0x78] sm:$0xff] %v304
  %609 = vst [vmem:[%s2 + $0x80] sm:$0xff] %v411
  %610 = vst.msk [vmem:[%s2 + $0x88] sm:$0xff] %vm594, %v518
  %611 = vst [vmem:[%s2 + $0x90] sm:$0xff] %v307
  %612 = vst [vmem:[%s2 + $0x98] sm:$0xff] %v414
  %613 = vst.msk [vmem:[%s2 + $0xa0] sm:$0xff] %vm594, %v521
  %614 = vst [vmem:[%s2 + $0xa8] sm:$0xff] %v310
  %615 = vst [vmem:[%s2 + $0xb0] sm:$0xff] %v417
  %616 = vst.msk [vmem:[%s2 + $0xb8] sm:$0xff] %vm594, %v524
  %617 = vst [vmem:[%s2 + $0xc0] sm:$0xff] %v313
  %618 = vst [vmem:[%s2 + $0xc8] sm:$0xff] %v420
  %619 = vst.msk [vmem:[%s2 + $0xd0] sm:$0xff] %vm594, %v527
  %620 = vst [vmem:[%s2 + $0xd8] sm:$0xff] %v316
  %621 = vst [vmem:[%s2 + $0xe0] sm:$0xff] %v423
  %622 = vst.msk [vmem:[%s2 + $0xe8] sm:$0xff] %vm594, %v530
  %623 = vst [vmem:[%s2 + $0xf0] sm:$0xff] %v319
  %624 = vst [vmem:[%s2 + $0xf8] sm:$0xff] %v426
  %625 = vst.msk [vmem:[%s2 + $0x100] sm:$0xff] %vm594, %v533
  %626 = vst [vmem:[%s2 + $0x108] sm:$0xff] %v322
  %627 = vst [vmem:[%s2 + $0x110] sm:$0xff] %v429
  %628 = vst.msk [vmem:[%s2 + $0x118] sm:$0xff] %vm594, %v536
  %629 = vst [vmem:[%s2 + $0x120] sm:$0xff] %v325
  %630 = vst [vmem:[%s2 + $0x128] sm:$0xff] %v432
  %631 = vst.msk [vmem:[%s2 + $0x130] sm:$0xff] %vm594, %v539
  %632 = vst [vmem:[%s2 + $0x138] sm:$0xff] %v328
  %633 = vst [vmem:[%s2 + $0x140] sm:$0xff] %v435
  %634 = vst.msk [vmem:[%s2 + $0x148] sm:$0xff] %vm594, %v542
  %635 = vst [vmem:[%s2 + $0x150] sm:$0xff] %v331
  %636 = vst [vmem:[%s2 + $0x158] sm:$0xff] %v438
  %637 = vst.msk [vmem:[%s2 + $0x160] sm:$0xff] %vm594, %v545
  %638 = vst [vmem:[%s2 + $0x168] sm:$0xff] %v334
  %639 = vst [vmem:[%s2 + $0x170] sm:$0xff] %v441
  %640 = vst.msk [vmem:[%s2 + $0x178] sm:$0xff] %vm594, %v548
  %641 = vst [vmem:[%s2 + $0x180] sm:$0xff] %v337
  %642 = vst [vmem:[%s2 + $0x188] sm:$0xff] %v444
  %643 = vst.msk [vmem:[%s2 + $0x190] sm:$0xff] %vm594, %v551
  %644 = vst [vmem:[%s2 + $0x198] sm:$0xff] %v340
  %645 = vst [vmem:[%s2 + $0x1a0] sm:$0xff] %v447
  %646 = vst.msk [vmem:[%s2 + $0x1a8] sm:$0xff] %vm594, %v554
  %647 = vst [vmem:[%s2 + $0x1b0] sm:$0xff] %v343
  %648 = vst [vmem:[%s2 + $0x1b8] sm:$0xff] %v450
  %649 = vst.msk [vmem:[%s2 + $0x1c0] sm:$0xff] %vm594, %v557
  %650 = vst [vmem:[%s2 + $0x1c8] sm:$0xff] %v346
  %651 = vst [vmem:[%s2 + $0x1d0] sm:$0xff] %v453
  %652 = vst.msk [vmem:[%s2 + $0x1d8] sm:$0xff] %vm594, %v560
  %653 = vst [vmem:[%s2 + $0x1e0] sm:$0xff] %v349
  %654 = vst [vmem:[%s2 + $0x1e8] sm:$0xff] %v456
  %655 = vst.msk [vmem:[%s2 + $0x1f0] sm:$0xff] %vm594, %v563
  %656 = vst [vmem:[%s2 + $0x1f8] sm:$0xff] %v352
  %657 = vst [vmem:[%s2 + $0x200] sm:$0xff] %v459
  %658 = vst.msk [vmem:[%s2 + $0x208] sm:$0xff] %vm594, %v566
  %659 = vst [vmem:[%s2 + $0x210] sm:$0xff] %v355
  %660 = vst [vmem:[%s2 + $0x218] sm:$0xff] %v462
  %661 = vst.msk [vmem:[%s2 + $0x220] sm:$0xff] %vm594, %v569
  %662 = vst [vmem:[%s2 + $0x228] sm:$0xff] %v358
  %663 = vst [vmem:[%s2 + $0x230] sm:$0xff] %v465
  %664 = vst.msk [vmem:[%s2 + $0x238] sm:$0xff] %vm594, %v572
  %665 = vst [vmem:[%s2 + $0x240] sm:$0xff] %v361
  %666 = vst [vmem:[%s2 + $0x248] sm:$0xff] %v468
  %667 = vst.msk [vmem:[%s2 + $0x250] sm:$0xff] %vm594, %v575
  %668 = vst [vmem:[%s2 + $0x258] sm:$0xff] %v364
  %669 = vst [vmem:[%s2 + $0x260] sm:$0xff] %v471
  %670 = vst.msk [vmem:[%s2 + $0x268] sm:$0xff] %vm594, %v578
  %671 = vst [vmem:[%s2 + $0x270] sm:$0xff] %v367
  %672 = vst [vmem:[%s2 + $0x278] sm:$0xff] %v474
  %673 = vst.msk [vmem:[%s2 + $0x280] sm:$0xff] %vm594, %v581
  %674 = vst [vmem:[%s2 + $0x288] sm:$0xff] %v370
  %675 = vst [vmem:[%s2 + $0x290] sm:$0xff] %v477
  %676 = vst.msk [vmem:[%s2 + $0x298] sm:$0xff] %vm594, %v584
  %677 = vst [vmem:[%s2 + $0x2a0] sm:$0xff] %v373
  %678 = vst [vmem:[%s2 + $0x2a8] sm:$0xff] %v480
  %679 = vst.msk [vmem:[%s2 + $0x2b0] sm:$0xff] %vm594, %v587
  %680 = vst [vmem:[%s2 + $0x2b8] sm:$0xff] %v376
  %681 = vst [vmem:[%s2 + $0x2c0] sm:$0xff] %v483
  %682 = vst.msk [vmem:[%s2 + $0x2c8] sm:$0xff] %vm594, %v590
  // Predicated region
  $region10: #{tpu_custom_call.1} parent=0 // pred_check
    _
  $region11: #{tpu_custom_call.1} parent=0 // pred_check_branch
    %684 = sbr.rel (0) target = $region13
  $region12: #{tpu_custom_call.1} parent=0 // pred_region
    _
  $region13: #{tpu_custom_call.1} parent=0 // pred_fallthru
    _
  // Predicated region
  $region14: #{tpu_custom_call.1} parent=0 // pred_check
    _
  $region15: #{tpu_custom_call.1} parent=0 // pred_check_branch
    %686 = sbr.rel (0) target = $region17
  $region16: #{tpu_custom_call.1} parent=0 // pred_region
    _
  $region17: #{tpu_custom_call.1} parent=0 // pred_fallthru
    _

</llo_original>
